<compile_context>
chip_gen: v6e
topology: v6e:2x2x1
jax: 0.10.0
libtpu: 0.0.40
codegen_flags: <defaults>
</compile_context>

<pallas_src>
import functools
import math

import jax
import jax.numpy as jnp
from jax import lax
from jax.experimental import pallas as pl
from jax.experimental.pallas import tpu as pltpu


def get_quantization_bounds(n_bits: int):
    # Symmetric signed range, same convention as the PyTorch reference.
    q_n = -(2 ** (n_bits - 1))
    q_p = 2 ** (n_bits - 1) - 1
    return float(q_n), float(q_p)


# ----------------------------------------------------------------------------
# Pass 1: fake-quantize the combined (w0 + alpha * lora_b @ lora_a) weight.
# One grid step per (n, k) weight tile; every operand block is DMA'd once.
# ----------------------------------------------------------------------------
def _dequant_kernel(w0_ref, la_ref, lb_ref, s_ref, wq_ref, *, alpha, q_n, q_p):
    w_lora = jnp.dot(lb_ref[...], la_ref[...],
                     preferred_element_type=jnp.float32)          # (tn, tk)
    w_comb = w0_ref[...] + alpha * w_lora                         # f32
    s = s_ref[...].astype(jnp.float32)                            # (tn,1) or (tn,tk)
    inv_s = 1.0 / (s + 1e-9)                                      # per-group reciprocal
    w_int = jnp.round(jnp.clip(w_comb * inv_s, q_n, q_p))
    wq_ref[...] = (w_int * s).astype(wq_ref.dtype)


# ----------------------------------------------------------------------------
# Pass 2: canonical tiled matmul  out = x @ w_qT + bias
# ----------------------------------------------------------------------------
def _matmul_bias_kernel(x_ref, wt_ref, b_ref, out_ref, acc_ref):
    k_i = pl.program_id(2)

    @pl.when(k_i == 0)
    def _init():
        acc_ref[...] = jnp.zeros_like(acc_ref)

    acc_ref[...] += jnp.dot(x_ref[...], wt_ref[...],
                            preferred_element_type=jnp.float32)

    @pl.when(k_i == pl.num_programs(2) - 1)
    def _finalize():
        out_ref[...] = (acc_ref[...] + b_ref[...].astype(jnp.float32)
                        ).astype(out_ref.dtype)


# ----------------------------------------------------------------------------
# Wrapper helpers
# ----------------------------------------------------------------------------
def _tpu_vmem_capacity_bytes():
    try:
        info = pltpu.get_tpu_info()
        cap = getattr(info, "vmem_capacity_bytes", None)
        if cap:
            return int(cap)
    except Exception:
        pass
    # Conservative fallback: assume the smallest per-TensorCore VMEM (v7x).
    return 64 * 1024 * 1024


def _vmem_limit(needed_bytes, cap):
    # Headroom for Mosaic-internal scratch; never above ~85% of physical VMEM.
    return int(min(0.85 * cap, max(2 * needed_bytes + (2 << 20), 32 << 20)))


def _pick_tile(dim, preferred, align):
    """Return (tile, padded_dim) with padded_dim % tile == 0 and
    (tile == padded_dim or tile % align == 0)."""
    if dim <= preferred:
        return dim, dim

    def best_divisor(d):
        t = (preferred // align) * align
        while t >= align:
            if d % t == 0:
                return t
            t -= align
        return None

    t = best_divisor(dim)
    if t is not None:
        return t, dim
    padded = ((dim + align - 1) // align) * align
    return best_divisor(padded), padded


def _pad2d(a, rows, cols, value=0.0):
    r, c = a.shape
    if r == rows and c == cols:
        return a
    return jnp.pad(a, ((0, rows - r), (0, cols - c)), constant_values=value)


# ----------------------------------------------------------------------------
# Public wrapper
# ----------------------------------------------------------------------------
def l4q_quantized_linear(x, w0, lora_a, lora_b, q_scale, bias, *,
                         alpha, n_bits, group_size,
                         compute_dtype=jnp.bfloat16,
                         tile_m=256, tile_n=256, tile_k=None):
    """Pallas implementation of L4QQuantizedLinear.forward (inference)."""
    out_f, in_f = w0.shape
    r = lora_a.shape[0]
    lead = x.shape[:-1]
    out_dtype = x.dtype
    x2d = x.reshape(-1, in_f)
    m = x2d.shape[0]

    q_n, q_p = get_quantization_bounds(n_bits)

    # --- effective group size (mirrors the PyTorch forward) ---
    numel = out_f * in_f
    eff_g = group_size
    if group_size != -1:
        if numel == 0 or numel < group_size or numel % group_size != 0:
            eff_g = -1
    if eff_g != -1 and q_scale.size != numel // eff_g:
        eff_g = -1  # reference falls back to the scalar path on size mismatch

    # --- compact scale representation ---
    # Row mode (scalar scale, or groups spanning whole rows of the row-major
    # flattened weight): one f32 scale per output row, broadcast over
    # in_features inside the kernel.
    if eff_g == -1:
        s0 = q_scale.reshape(-1)[0].astype(jnp.float32)
        scale2d = jnp.broadcast_to(s0, (out_f, 1))
        scale_dense = False
    elif eff_g % in_f == 0:
        rows_per_group = eff_g // in_f
        scale2d = jnp.repeat(q_scale.reshape(-1).astype(jnp.float32),
                             rows_per_group).reshape(out_f, 1)
        scale_dense = False
    else:
        # TODO(synk): sub-row quant groups still stream a dense (out, in) scale
        # map (once); a compact (out, in//group) layout needs group-aligned K tiles.
        num_groups = numel // eff_g
        scale2d = jnp.broadcast_to(
            q_scale.reshape(num_groups, 1).astype(jnp.float32),
            (num_groups, eff_g)).reshape(out_f, in_f)
        scale_dense = True

    # --- generation-aware tile selection ---
    vmem_cap = _tpu_vmem_capacity_bytes()
    small_vmem = vmem_cap <= 96 * 1024 * 1024          # v7x: 64 MiB per TC
    if tile_k is None:
        # Large tk amortizes the per-step accumulator RMW (and v5e's single
        # vst slot); v7x keeps 512 only to bound per-block double-buffer VMEM.
        tile_k = 512 if small_vmem else 1024
    m_align = 16 if jnp.dtype(compute_dtype).itemsize < 4 else 8

    tm, mp = _pick_tile(m, tile_m, m_align)
    tn, np_ = _pick_tile(out_f, tile_n, 128)
    tk, kp = _pick_tile(in_f, tile_k, 128)
    n_t, m_t, k_t = np_ // tn, mp // tm, kp // tk

    cd_itm = jnp.dtype(compute_dtype).itemsize
    out_itm = jnp.dtype(out_dtype).itemsize

    # --- pad operands.  Padded weights / x are zero and padded scales are 1.0,
    #     so padded w_q entries are exactly zero and contribute nothing. ---
    x2d = _pad2d(x2d.astype(compute_dtype), mp, kp)
    w0p = _pad2d(w0.astype(jnp.float32), np_, kp)
    lap = _pad2d(lora_a.astype(jnp.float32), r, kp)
    lbp = _pad2d(lora_b.astype(jnp.float32), np_, r)
    if scale_dense:
        sp = _pad2d(scale2d, np_, kp, value=1.0)
        s_spec = pl.BlockSpec((tn, tk), lambda n, k: (n, k))
        s_blk_bytes = tn * tk * 4
    else:
        sp = _pad2d(scale2d, np_, 1, value=1.0)
        s_spec = pl.BlockSpec((tn, 1), lambda n, k: (n, 0))
        s_blk_bytes = tn * 4
    if bias is None:
        b2d = jnp.zeros((1, np_), jnp.float32)
    else:
        b2d = _pad2d(bias.reshape(1, out_f).astype(jnp.float32), 1, np_)

    # ---------------- Pass 1: fake-quantize the weights (one sweep) ----------
    deq_vmem = (2 * (tn * tk * 4) + 2 * (r * tk * 4) + 2 * (tn * r * 4)
                + 2 * s_blk_bytes + 2 * (tn * tk * cd_itm))
    deq_kernel = functools.partial(_dequant_kernel, alpha=float(alpha),
                                   q_n=q_n, q_p=q_p)
    wq = pl.pallas_call(
        deq_kernel,
        out_shape=jax.ShapeDtypeStruct((np_, kp), compute_dtype),
        grid_spec=pltpu.PrefetchScalarGridSpec(
            num_scalar_prefetch=0,
            grid=(n_t, k_t),
            in_specs=[
                pl.BlockSpec((tn, tk), lambda n, k: (n, k)),   # w0
                pl.BlockSpec((r, tk), lambda n, k: (0, k)),    # lora_a
                pl.BlockSpec((tn, r), lambda n, k: (n, 0)),    # lora_b
                s_spec,                                        # q_scale (compact)
            ],
            out_specs=pl.BlockSpec((tn, tk), lambda n, k: (n, k)),
        ),
        compiler_params=pltpu.CompilerParams(
            dimension_semantics=("parallel", "parallel"),
            vmem_limit_bytes=_vmem_limit(deq_vmem, vmem_cap)),
        cost_estimate=pl.CostEstimate(
            flops=int(2 * np_ * kp * r),
            transcendentals=0,
            bytes_accessed=int(np_ * kp * (4 + cd_itm) + r * kp * 4 * n_t
                               + np_ * r * 4 + sp.size * 4)),
    )(w0p, lap, lbp, sp)

    # One-time XLA transpose so the matmul pass contracts canonically
    # (tm,tk)@(tk,tn); amortized over all M tiles / repeated forward calls.
    wq_t = jnp.transpose(wq)                                   # (kp, np_)

    # ---------------- Pass 2: out = x @ w_q.T + bias -------------------------
    mm_vmem = (2 * (tm * tk * cd_itm) + 2 * (tk * tn * cd_itm) + 2 * (tn * 4)
               + 2 * (tm * tn * out_itm) + tm * tn * 4)
    out2d = pl.pallas_call(
        _matmul_bias_kernel,
        out_shape=jax.ShapeDtypeStruct((mp, np_), out_dtype),
        grid_spec=pltpu.PrefetchScalarGridSpec(
            num_scalar_prefetch=0,
            grid=(m_t, n_t, k_t),
            in_specs=[
                pl.BlockSpec((tm, tk), lambda mm, n, k: (mm, k)),  # x
                pl.BlockSpec((tk, tn), lambda mm, n, k: (k, n)),   # w_q.T
                pl.BlockSpec((1, tn), lambda mm, n, k: (0, n)),    # bias
            ],
            out_specs=pl.BlockSpec((tm, tn), lambda mm, n, k: (mm, n)),
            scratch_shapes=[pltpu.VMEM((tm, tn), jnp.float32)],    # f32 accumulator
        ),
        compiler_params=pltpu.CompilerParams(
            dimension_semantics=("parallel", "parallel", "arbitrary"),
            vmem_limit_bytes=_vmem_limit(mm_vmem, vmem_cap)),
        cost_estimate=pl.CostEstimate(
            flops=int(2 * mp * np_ * kp),
            transcendentals=0,
            bytes_accessed=int(mp * kp * cd_itm * n_t + kp * np_ * cd_itm * m_t
                               + mp * np_ * out_itm + np_ * 4)),
    )(x2d, wq_t, b2d)

    return out2d[:m, :out_f].reshape(*lead, out_f)


# ----------------------------------------------------------------------------
# Pure-JAX reference (forward only; matches kernel numerics: multiply by the
# reciprocal of (scale + 1e-9), which differs from a direct divide by <= 1 ulp)
# ----------------------------------------------------------------------------
def l4q_quantized_linear_ref(x, w0, lora_a, lora_b, q_scale, bias, *,
                             alpha, n_bits, group_size):
    out_f, in_f = w0.shape
    q_n, q_p = get_quantization_bounds(n_bits)
    hp = lax.Precision.HIGHEST
    w_comb = w0 + alpha * jnp.dot(lora_b, lora_a, precision=hp)
    numel = out_f * in_f
    eff_g = group_size
    if group_size != -1 and (numel == 0 or numel < group_size or numel % group_size != 0):
        eff_g = -1
    if eff_g != -1 and q_scale.size == numel // eff_g:
        g = w_comb.reshape(numel // eff_g, eff_g)
        s = q_scale.reshape(-1, 1)
        w_q = (jnp.round(jnp.clip(g * (1.0 / (s + 1e-9)), q_n, q_p)) * s
               ).reshape(out_f, in_f)
    else:
        s = q_scale.reshape(-1)[0]
        w_q = jnp.round(jnp.clip(w_comb * (1.0 / (s + 1e-9)), q_n, q_p)) * s
    out = jnp.einsum('...i,oi->...o', x, w_q, precision=hp)
    if bias is not None:
        out = out + bias
    return out


def _make_params(key, in_features, out_features, lora_rank, alpha, n_bits, group_size):
    k_w0, k_a, k_b, k_bias = jax.random.split(key, 4)
    bound_w = 1.0 / math.sqrt(in_features)
    w0 = jax.random.uniform(k_w0, (out_features, in_features),
                            minval=-bound_w, maxval=bound_w, dtype=jnp.float32)
    lora_a = jax.random.uniform(k_a, (lora_rank, in_features),
                                minval=-bound_w, maxval=bound_w, dtype=jnp.float32)
    # Module inits lora_b to zeros; use small non-zero values so the LoRA path
    # is exercised.
    lora_b = 0.01 * jax.random.normal(k_b, (out_features, lora_rank), dtype=jnp.float32)
    bias = jax.random.uniform(k_bias, (out_features,),
                              minval=-bound_w, maxval=bound_w, dtype=jnp.float32)
    _, q_p_val = get_quantization_bounds(n_bits)
    w_comb_init = w0 + alpha * (lora_b @ lora_a)
    numel = out_features * in_features
    if group_size != -1 and numel % group_size == 0 and numel >= group_size:
        num_groups = numel // group_size
        q_scale = (jnp.max(jnp.abs(w_comb_init.reshape(num_groups, group_size)), axis=1)
                   / q_p_val).astype(jnp.float32)
    else:
        q_scale = (jnp.max(jnp.abs(w_comb_init)) / q_p_val).reshape(1).astype(jnp.float32)
    return w0, lora_a, lora_b, q_scale, bias


if __name__ == "__main__":
    # TODO(synk): only the forward pass is implemented; the custom STE backward
    # (L4QQuantizedLinearFunction.backward) and its debug printing are not.
    key = jax.random.PRNGKey(0)
    k_small, k_x1, k_big, k_x2 = jax.random.split(key, 4)

    # --- Small case: per-row quantization groups (row-mode scale path) ------
    batch, seq = 2, 8
    in_features, out_features, lora_rank = 32, 32, 4
    n_bits, alpha = 4, 1.0
    group_size = in_features

    w0, lora_a, lora_b, q_scale, bias = _make_params(
        k_small, in_features, out_features, lora_rank, alpha, n_bits, group_size)
    x = jax.random.normal(k_x1, (batch, seq, in_features), dtype=jnp.float32)

    ref = l4q_quantized_linear_ref(x, w0, lora_a, lora_b, q_scale, bias,
                                   alpha=alpha, n_bits=n_bits, group_size=group_size)

    # f32 MXU path: tight check.
    out_f32 = l4q_quantized_linear(x, w0, lora_a, lora_b, q_scale, bias,
                                   alpha=alpha, n_bits=n_bits, group_size=group_size,
                                   compute_dtype=jnp.float32)
    out_f32 = jax.block_until_ready(out_f32)
    assert out_f32.shape == (batch, seq, out_features)
    assert jnp.allclose(out_f32, ref, atol=1e-4, rtol=1e-4), "f32 mismatch vs reference"

    # bf16 MXU path (default): fake-quant math stays f32, only the streamed
    # w_q / x operands are bf16, so use a looser tolerance.
    out_bf16 = l4q_quantized_linear(x, w0, lora_a, lora_b, q_scale, bias,
                                    alpha=alpha, n_bits=n_bits, group_size=group_size,
                                    compute_dtype=jnp.bfloat16)
    out_bf16 = jax.block_until_ready(out_bf16)
    assert jnp.allclose(out_bf16.astype(jnp.float32), ref,
                        atol=5e-2, rtol=5e-2), "bf16 mismatch vs reference"

    # Scalar-scale fallback path (group_size = -1).
    w_comb_init = w0 + alpha * (lora_b @ lora_a)
    _, q_p_val = get_quantization_bounds(n_bits)
    q_scale_scalar = (jnp.max(jnp.abs(w_comb_init)) / q_p_val).reshape(1).astype(jnp.float32)
    ref_s = l4q_quantized_linear_ref(x, w0, lora_a, lora_b, q_scale_scalar, bias,
                                     alpha=alpha, n_bits=n_bits, group_size=-1)
    out_s = l4q_quantized_linear(x, w0, lora_a, lora_b, q_scale_scalar, bias,
                                 alpha=alpha, n_bits=n_bits, group_size=-1,
                                 compute_dtype=jnp.float32)
    out_s = jax.block_until_ready(out_s)
    assert jnp.allclose(out_s, ref_s, atol=1e-4, rtol=1e-4), "scalar-scale mismatch"

    # --- Multi-tile case: sub-row quant groups (dense scale path), exercises
    #     n_t = k_t = 2 (accumulator init/finalize + multiple dequant tiles). --
    in_f2, out_f2, gs2 = 256, 256, 64
    w0b, la_b, lb_b, qs_b, bias_b = _make_params(
        k_big, in_f2, out_f2, lora_rank, alpha, n_bits, gs2)
    x2 = jax.random.normal(k_x2, (2, 32, in_f2), dtype=jnp.float32)
    ref2 = l4q_quantized_linear_ref(x2, w0b, la_b, lb_b, qs_b, bias_b,
                                    alpha=alpha, n_bits=n_bits, group_size=gs2)
    out2 = l4q_quantized_linear(x2, w0b, la_b, lb_b, qs_b, bias_b,
                                alpha=alpha, n_bits=n_bits, group_size=gs2,
                                compute_dtype=jnp.float32,
                                tile_m=64, tile_n=128, tile_k=128)
    out2 = jax.block_until_ready(out2)
    assert out2.shape == (2, 32, out_f2)
    assert jnp.allclose(out2, ref2, atol=1e-3, rtol=1e-3), "multi-tile mismatch"

    print("KERNEL_OK")
</pallas_src>

<mosaic_0001>
module attributes {stable_mosaic.version = 11 : i64} {
  func.func @_dequant_kernel(%arg0: i32, %arg1: i32, %arg2: memref<32x32xf32, #tpu.memory_space<vmem>>, %arg3: memref<4x32xf32, #tpu.memory_space<vmem>>, %arg4: memref<32x4xf32, #tpu.memory_space<vmem>>, %arg5: memref<32x1xf32, #tpu.memory_space<vmem>>, %arg6: memref<32x32xf32, #tpu.memory_space<vmem>>) attributes {dimension_semantics = [#tpu.dimension_semantics<parallel>, #tpu.dimension_semantics<parallel>], iteration_bounds = array<i64: 1, 1>, scalar_prefetch = 0 : i64, scratch_operands = 0 : i64, tpu.core_type = #tpu.core_type<tc>, window_params = [{transform_indices = @transform_0, window_bounds = array<i64: 32, 32>}, {transform_indices = @transform_1, window_bounds = array<i64: 4, 32>}, {transform_indices = @transform_2, window_bounds = array<i64: 32, 4>}, {transform_indices = @transform_3, window_bounds = array<i64: 32, 1>}, {transform_indices = @transform_4, window_bounds = array<i64: 32, 32>}]} {
    %c0 = arith.constant 0 : index
    %c0_0 = arith.constant 0 : index
    %0 = vector.load %arg4[%c0, %c0_0] : memref<32x4xf32, #tpu.memory_space<vmem>>, vector<32x4xf32>
    %c0_1 = arith.constant 0 : index
    %c0_2 = arith.constant 0 : index
    %1 = vector.load %arg3[%c0_1, %c0_2] : memref<4x32xf32, #tpu.memory_space<vmem>>, vector<4x32xf32>
    %cst = arith.constant dense<0.000000e+00> : vector<32x32xf32>
    %2 = tpu.matmul %0, %1, %cst {dimension_numbers = #tpu.dot_dimension_numbers<[1], [0], [0], [1], [0, 0, 1, 1], [], []>} : vector<32x4xf32>, vector<4x32xf32>, vector<32x32xf32> -> vector<32x32xf32>
    %c0_3 = arith.constant 0 : index
    %c0_4 = arith.constant 0 : index
    %3 = vector.load %arg2[%c0_3, %c0_4] : memref<32x32xf32, #tpu.memory_space<vmem>>, vector<32x32xf32>
    %cst_5 = arith.constant 1.000000e+00 : f32
    %4 = vector.broadcast %cst_5 : f32 to vector<32x32xf32>
    %5 = arith.mulf %4, %2 : vector<32x32xf32>
    %6 = arith.addf %3, %5 : vector<32x32xf32>
    %c0_6 = arith.constant 0 : index
    %c0_7 = arith.constant 0 : index
    %7 = vector.load %arg5[%c0_6, %c0_7] : memref<32x1xf32, #tpu.memory_space<vmem>>, vector<32x1xf32>
    %cst_8 = arith.constant 9.99999971E-10 : f32
    %8 = vector.broadcast %cst_8 : f32 to vector<32x1xf32>
    %9 = arith.addf %7, %8 : vector<32x1xf32>
    %cst_9 = arith.constant 1.000000e+00 : f32
    %10 = vector.broadcast %cst_9 : f32 to vector<32x1xf32>
    %11 = arith.divf %10, %9 : vector<32x1xf32>
    %12 = vector.broadcast %11 : vector<32x1xf32> to vector<32x32xf32>
    %13 = arith.mulf %6, %12 : vector<32x32xf32>
    %cst_10 = arith.constant -8.000000e+00 : f32
    %cst_11 = arith.constant 7.000000e+00 : f32
    %14 = vector.broadcast %cst_10 : f32 to vector<32x32xf32>
    %15 = arith.maximumf %14, %13 : vector<32x32xf32>
    %16 = vector.broadcast %cst_11 : f32 to vector<32x32xf32>
    %17 = arith.minimumf %16, %15 : vector<32x32xf32>
    %18 = math.roundeven %17 : vector<32x32xf32>
    %19 = vector.broadcast %7 : vector<32x1xf32> to vector<32x32xf32>
    %20 = arith.mulf %18, %19 : vector<32x32xf32>
    %c0_12 = arith.constant 0 : index
    %c0_13 = arith.constant 0 : index
    %21 = vector.load %arg6[%c0_12, %c0_13] : memref<32x32xf32, #tpu.memory_space<vmem>>, vector<32x32xf32>
    tpu.vector_store %arg6[%c0_12, %c0_13], %20 {strides = array<i32>} : memref<32x32xf32, #tpu.memory_space<vmem>>, vector<32x32xf32>,
    return
  }
  func.func @transform_0(%arg0: i32, %arg1: i32) -> (i32, i32) {
    %c0_i32 = arith.constant 0 : i32
    return %arg0, %arg1 : i32, i32
  }
  func.func @transform_1(%arg0: i32, %arg1: i32) -> (i32, i32) {
    %c0_i32 = arith.constant 0 : i32
    %c0_i32_0 = arith.constant 0 : i32
    return %c0_i32, %arg1 : i32, i32
  }
  func.func @transform_2(%arg0: i32, %arg1: i32) -> (i32, i32) {
    %c0_i32 = arith.constant 0 : i32
    %c0_i32_0 = arith.constant 0 : i32
    return %arg0, %c0_i32 : i32, i32
  }
  func.func @transform_3(%arg0: i32, %arg1: i32) -> (i32, i32) {
    %c0_i32 = arith.constant 0 : i32
    %c0_i32_0 = arith.constant 0 : i32
    return %arg0, %c0_i32 : i32, i32
  }
  func.func @transform_4(%arg0: i32, %arg1: i32) -> (i32, i32) {
    %c0_i32 = arith.constant 0 : i32
    return %arg0, %arg1 : i32, i32
  }
}

</mosaic_0001>

<llo_original>
// kernel: tpu_custom_call.1
$region0: #{tpu_custom_call.1}
  #allocation0 [shape = 'u32[]', space=smem, size = 0x4, offset = 0x4, fixed_abs, tag = 'smem constant byte address 0x4 - core index']
  #allocation1 [shape = 'u32[144,128]{1,0:T(1,128)}', space=vmem, size = 0x12000, scoped, tag = 'internal scratch']
  %s0 = inlined_call_operand.vmem [shape: f32[32,32], index: 0, kind: input, shape index: {}]
  %s1 = inlined_call_operand.vmem [shape: f32[4,32], index: 1, kind: input, shape index: {}]
  %s2 = inlined_call_operand.vmem [shape: f32[32,4], index: 2, kind: input, shape index: {}]
  %s3 = inlined_call_operand.vmem [shape: f32[32,1], index: 3, kind: input, shape index: {}]
  %s4 = inlined_call_operand.hbm [shape: f32[32,32], index: 4, kind: output, shape index: {}]
  %s5 = sld [smem:[#allocation0]]
  $region26: #{tpu_custom_call.1} parent=0
    _
  %s7 = ssub.s32 1, %s5
  %s8 = scalar_select 0, %s7, %s5
  $region1: #{tpu_custom_call.1} parent=0
    #allocation2 [shape = 'u8[16384]{0}', space=vmem, size = 0x4000, scoped, tag = 'output window, operand 0, single buffered']
    #allocation3 [shape = 's32[1]{0}', space=sflag, size = 0x4, scoped, tag = 'scoped memory for tpu_custom_call.1']
    %9 = vsyncpa [#allocation3], 0
    // Predicated region
    $region2: #{tpu_custom_call.1} parent=1 // pred_check
      _
    $region3: #{tpu_custom_call.1} parent=1 // pred_check_branch
      %11 = sbr.rel (0) target = $region5
    $region4: #{tpu_custom_call.1} parent=1 // pred_region
      _
    $region5: #{tpu_custom_call.1} parent=1 // pred_fallthru
      _
    // Predicated region
    $region6: #{tpu_custom_call.1} parent=1 // pred_check
      _
    $region7: #{tpu_custom_call.1} parent=1 // pred_check_branch
      %13 = sbr.rel (0) target = $region9
    $region8: #{tpu_custom_call.1} parent=1 // pred_region
      _
    $region9: #{tpu_custom_call.1} parent=1 // pred_fallthru
      _
    // Predicated region
    $region10: #{tpu_custom_call.1} parent=1 // pred_check
      _
    $region11: #{tpu_custom_call.1} parent=1 // pred_check_branch
      %15 = sbr.rel (0) target = $region13
    $region12: #{tpu_custom_call.1} parent=1 // pred_region
      _
    $region13: #{tpu_custom_call.1} parent=1 // pred_fallthru
      _
    // Predicated region
    $region14: #{tpu_custom_call.1} parent=1 // pred_check
      _
    $region15: #{tpu_custom_call.1} parent=1 // pred_check_branch
      %17 = sbr.rel (0) target = $region17
    $region16: #{tpu_custom_call.1} parent=1 // pred_region
      _
    $region17: #{tpu_custom_call.1} parent=1 // pred_fallthru
      _
    %v18 = vld [vmem:[%s2] sm:$0xff]
    %v19 = vld [vmem:[%s2 + $0x8] sm:$0xff]
    %v20 = vld [vmem:[%s2 + $0x10] sm:$0xff]
    %v21 = vld [vmem:[%s2 + $0x18] sm:$0xff]
    %v22 = vld [vmem:[%s1] sm:$0xf]
    %vm23 = vcmask 31744
    %v25 = vsel %vm23, %v18, 0
    %v28 = vsel %vm23, %v19, 0
    %v31 = vsel %vm23, %v20, 0
    %v34 = vsel %vm23, %v21, 0
    %vm36 = vcmask 1043456
    %v38 = vsel %vm36, %v22, 0
    %40 = vmatprep.subr.mxu0 0.0
    %41 = vmatpush1.msra.mxu0 0.0
    %42 = vmatprep.subr.mxu0 0.0
    %43 = vmatpush1.msra.mxu0 0.0
    %44 = vmatprep.subr.mxu0 0.0
    %45 = vmatpush1.msra.mxu0 0.0
    %46 = vmatprep.subr.mxu0 0.0
    %47 = vmatpush1.msra.mxu0 0.0
    %48 = vmatprep.subr.mxu0 0.0
    %49 = vmatpush1.msra.mxu0 0.0
    %50 = vmatprep.subr.mxu0 0.0
    %51 = vmatpush1.msra.mxu0 0.0
    %52 = vmatprep.subr.mxu0 0.0
    %53 = vmatpush1.msra.mxu0 0.0
    %54 = vmatprep.subr.mxu0 0.0
    %55 = vmatpush1.msra.mxu0 0.0
    %56 = vmatprep.subr.mxu0 0.0
    %57 = vmatpush1.msra.mxu0 0.0
    %58 = vmatprep.subr.mxu0 0.0
    %59 = vmatpush1.msra.mxu0 0.0
    %60 = vmatprep.subr.mxu0 0.0
    %61 = vmatpush1.msra.mxu0 0.0
    %62 = vmatprep.subr.mxu0 0.0
    %63 = vmatpush1.msra.mxu0 0.0
    %64 = vmatprep.subr.mxu0 0.0
    %65 = vmatpush1.msra.mxu0 0.0
    %66 = vmatprep.subr.mxu0 0.0
    %67 = vmatpush1.msra.mxu0 0.0
    %68 = vmatprep.subr.mxu0 0.0
    %69 = vmatpush1.msra.mxu0 0.0
    %70 = vmatprep.subr.mxu0 0.0
    %71 = vmatpush1.msra.mxu0 %v38
    %72 = vmatprep.subr.mxu0 0.0
    %73 = vmatpush2.msra.mxu0 0.0
    %74 = vmatprep.subr.mxu0 0.0
    %75 = vmatpush2.msra.mxu0 0.0
    %76 = vmatprep.subr.mxu0 0.0
    %77 = vmatpush2.msra.mxu0 0.0
    %78 = vmatprep.subr.mxu0 0.0
    %79 = vmatpush2.msra.mxu0 0.0
    %80 = vmatprep.subr.mxu0 0.0
    %81 = vmatpush2.msra.mxu0 0.0
    %82 = vmatprep.subr.mxu0 0.0
    %83 = vmatpush2.msra.mxu0 0.0
    %84 = vmatprep.subr.mxu0 0.0
    %85 = vmatpush2.msra.mxu0 0.0
    %86 = vmatprep.subr.mxu0 0.0
    %87 = vmatpush2.msra.mxu0 0.0
    %88 = vmatprep.subr.mxu0 0.0
    %89 = vmatpush2.msra.mxu0 0.0
    %90 = vmatprep.subr.mxu0 0.0
    %91 = vmatpush2.msra.mxu0 0.0
    %92 = vmatprep.subr.mxu0 0.0
    %93 = vmatpush2.msra.mxu0 0.0
    %94 = vmatprep.subr.mxu0 0.0
    %95 = vmatpush2.msra.mxu0 0.0
    %96 = vmatprep.subr.mxu0 0.0
    %97 = vmatpush2.msra.mxu0 0.0
    %98 = vmatprep.subr.mxu0 0.0
    %99 = vmatpush2.msra.mxu0 0.0
    %100 = vmatprep.subr.mxu0 0.0
    %101 = vmatpush2.msra.mxu0 0.0
    %102 = vmatprep.subr.mxu0 0.0
    %103 = vmatpush2.msra.mxu0 0.0
    %104 = vmatprep.mubr.f32.mxu0 0.0
    %105 = vmatmul.mubr.f32.gmra.mxu0 %v25
    %v106 = vpop.f32.mrf.mxu0
    %v107 = vadd.f32 0.0, %v106
    %v108 = vpop.f32.mrf.mxu0
    %109 = vmatprep.mubr.f32.mxu0 0.0
    %110 = vmatmul.mubr.f32.gmra.mxu0 %v28
    %v111 = vpop.f32.mrf.mxu0
    %v112 = vadd.f32 0.0, %v111
    %v113 = vpop.f32.mrf.mxu0
    %114 = vmatprep.mubr.f32.mxu0 0.0
    %115 = vmatmul.mubr.f32.gmra.mxu0 %v31
    %v116 = vpop.f32.mrf.mxu0
    %v117 = vadd.f32 0.0, %v116
    %v118 = vpop.f32.mrf.mxu0
    %119 = vmatprep.mubr.f32.mxu0 0.0
    %120 = vmatmul.mubr.f32.gmra.mxu0 %v34
    %v121 = vpop.f32.mrf.mxu0
    %v122 = vadd.f32 0.0, %v121
    %v123 = vpop.f32.mrf.mxu0
    %124 = vdwg.mxu0
    %v125 = vld [vmem:[%s0] sm:$0xff]
    %v126 = vld [vmem:[%s0 + $0x8] sm:$0xff]
    %v127 = vld [vmem:[%s0 + $0x10] sm:$0xff]
    %v128 = vld [vmem:[%s0 + $0x18] sm:$0xff]
    %v129 = vadd.f32 %v125, %v107
    %v130 = vadd.f32 %v126, %v112
    %v131 = vadd.f32 %v127, %v117
    %v132 = vadd.f32 %v128, %v122
    %v133 = vld [vmem:[%s3] sm:$0xff]
    %v134 = vld [vmem:[%s3 + $0x8] sm:$0xff]
    %v135 = vld [vmem:[%s3 + $0x10] sm:$0xff]
    %v136 = vld [vmem:[%s3 + $0x18] sm:$0xff]
    %v137 = vadd.f32 %v133, 1e-09
    %v138 = vadd.f32 %v134, 1e-09
    %v139 = vadd.f32 %v135, 1e-09
    %v140 = vadd.f32 %v136, 1e-09
    %v141 = vrcp.pop %v137
    %v142 = vmul.f32 1.0, %v141
    %v143 = vrcp.pop %v138
    %v144 = vmul.f32 1.0, %v143
    %v145 = vrcp.pop %v139
    %v146 = vmul.f32 1.0, %v145
    %v147 = vrcp.pop %v140
    %v148 = vmul.f32 1.0, %v147
    %150 = vset.pattern.permute.xlu0 0
    %151 = vperm.xlu0 %150, %v142
    %v152 = vpop.permute.xlu0 %151
    %155 = vset.pattern.permute.xlu0 0
    %156 = vperm.xlu0 %155, %v144
    %v157 = vpop.permute.xlu0 %156
    %160 = vset.pattern.permute.xlu0 0
    %161 = vperm.xlu0 %160, %v146
    %v162 = vpop.permute.xlu0 %161
    %165 = vset.pattern.permute.xlu0 0
    %166 = vperm.xlu0 %165, %v148
    %v167 = vpop.permute.xlu0 %166
    %v169 = vmul.f32 %v129, %v152
    %v170 = vmul.f32 %v130, %v157
    %v171 = vmul.f32 %v131, %v162
    %v172 = vmul.f32 %v132, %v167
    %v173 = vmax.f32 %v169, -8.0
    %v174 = vmax.f32 %v170, -8.0
    %v175 = vmax.f32 %v171, -8.0
    %v176 = vmax.f32 %v172, -8.0
    %v177 = vmin.f32 %v173, 7.0
    %v178 = vmin.f32 %v174, 7.0
    %v179 = vmin.f32 %v175, 7.0
    %v180 = vmin.f32 %v176, 7.0
    %v181 = vround.ne.pseudo %v177
    %v182 = vround.ne.pseudo %v178
    %v183 = vround.ne.pseudo %v179
    %v184 = vround.ne.pseudo %v180
    %186 = vset.pattern.permute.xlu0 0
    %187 = vperm.xlu0 %186, %v133
    %v188 = vpop.permute.xlu0 %187
    %191 = vset.pattern.permute.xlu0 0
    %192 = vperm.xlu0 %191, %v134
    %v193 = vpop.permute.xlu0 %192
    %196 = vset.pattern.permute.xlu0 0
    %197 = vperm.xlu0 %196, %v135
    %v198 = vpop.permute.xlu0 %197
    %201 = vset.pattern.permute.xlu0 0
    %202 = vperm.xlu0 %201, %v136
    %v203 = vpop.permute.xlu0 %202
    %v205 = vmul.f32 %v181, %v188
    %v206 = vmul.f32 %v182, %v193
    %v207 = vmul.f32 %v183, %v198
    %v208 = vmul.f32 %v184, %v203
    %vm209 = vcmask 261120
    %210 = vst.msk [vmem:[#allocation2] sm:$0xff] %vm209, %v205
    %211 = vst.msk [vmem:[#allocation2 + $0x8] sm:$0xff] %vm209, %v206
    %212 = vst.msk [vmem:[#allocation2 + $0x10] sm:$0xff] %vm209, %v207
    %213 = vst.msk [vmem:[#allocation2 + $0x18] sm:$0xff] %vm209, %v208
    // Predicated region
    $region18: #{tpu_custom_call.1} parent=1 // pred_check
      _
    $region19: #{tpu_custom_call.1} parent=1 // pred_check_branch
      %215 = sbr.rel (0) target = $region21
    $region20: #{tpu_custom_call.1} parent=1 // pred_region
      %s217 = ssub.s32 512, 512
      %218 = vsyncadd [#allocation3], %s217
      %s219 = sshll.u32 [#allocation2], 4
      %s220 = int_to_ptr.vmem [resolvable:$true] %s219
      %225 = dma.vmem_to_hbm [thread:$0]  %s220, 512, %s4, [#allocation3], 128, 128, 8
    $region21: #{tpu_custom_call.1} parent=1 // pred_fallthru
      _
    // Predicated region
    $region22: #{tpu_custom_call.1} parent=1 // pred_check
      _
    $region23: #{tpu_custom_call.1} parent=1 // pred_check_branch
      %227 = sbr.rel (0) target = $region25
    $region24: #{tpu_custom_call.1} parent=1 // pred_region
      %228 = dma.done [#allocation3], 512
    $region25: #{tpu_custom_call.1} parent=1 // pred_fallthru
      _
    %229 = vsyncpa [#allocation3], 1

</llo_original>
